<compile_context>
chip_gen: v5e
topology: v5e:2x2
jax: 0.10.0
libtpu: 0.0.40
codegen_flags: <defaults>
</compile_context>

<pallas_src>
import functools

import jax
import jax.numpy as jnp
from jax import lax
from jax.experimental import pallas as pl
from jax.experimental.pallas import tpu as pltpu


def _round_up(x, m):
    return ((x + m - 1) // m) * m


def _edge_onehot_kernel(idx_ref, attr_ref, table_ref, out_ref, *,
                        mask_hsg_edges: bool, dim_in_p: int, pack: int, d: int):
    """One grid step over `tile_rows` packed rows (pack edges per 128-lane row).

    idx_ref   : (tile_rows, pack)           int32 edge-type codes
    attr_ref  : (tile_rows, pack*d)         packed edge features
    table_ref : (pack*dim_in_p, pack*d)     block-diagonal embedding table
    out_ref   : (tile_rows, pack*d)
    """
    tile_rows = idx_ref.shape[0]
    lanes = pack * d
    k = pack * dim_in_p

    # One-hot selection matrix: row r has exactly `pack` ones, one per lane
    # group g, at column g*dim_in_p + idx[r, g].  The shifted column ranges of
    # the groups are disjoint, so a logical OR accumulates them exactly.
    iota_k = lax.broadcasted_iota(jnp.int32, (tile_rows, k), 1)
    onehot = (idx_ref[:, 0:1] == iota_k)
    for g in range(1, pack):
        onehot = onehot | ((idx_ref[:, g:g + 1] + g * dim_in_p) == iota_k)

    # Embedding gather = one-hot @ block-diagonal table on the MXU.
    # Exact: each output lane receives exactly one 1.0 * table-entry contribution.
    embs = jnp.dot(onehot.astype(jnp.float32),
                   table_ref[...].astype(jnp.float32),
                   preferred_element_type=jnp.float32)       # (tile_rows, lanes)
    embs = embs.astype(out_ref.dtype)
    attr = attr_ref[...]                                      # native dtype

    if mask_hsg_edges:
        # Per-lane-group mask: lane group g of row r selects the embedding iff
        # idx[r, g] > 0, otherwise keeps the original edge feature.
        group = lax.broadcasted_iota(jnp.int32, (tile_rows, lanes), 1) // d
        mask = (idx_ref[:, 0:1] > 0) & (group == 0)
        for g in range(1, pack):
            mask = mask | ((idx_ref[:, g:g + 1] > 0) & (group == g))
        out_ref[...] = jnp.where(mask, embs, attr)
    else:
        out_ref[...] = embs + attr


def edge_one_hot(edge_onehot, edge_attr, table, *, mask_hsg_edges=False,
                 max_tile_rows=2048):
    """Pallas implementation of EdgeOneHot.forward.

    edge_onehot: [E] integer edge type codes (0 .. dim_in-1)
    edge_attr:   [E, dim_out] float edge features
    table:       [dim_in, dim_out] embedding weight (nn.Embedding.weight)
    """
    E, D = edge_attr.shape
    dim_in = table.shape[0]
    out_dtype = edge_attr.dtype

    # Lane-dense packing: put `pack` consecutive edges on one 128-lane row when
    # dim_out divides 128; otherwise fall back to one edge per row.
    pack = 128 // D if (D < 128 and 128 % D == 0) else 1
    lanes = pack * D

    # Pad the tiny table to the f32 sublane tile (8 rows); build the
    # block-diagonal table so each lane group gathers from its own copy.
    dim_in_p = _round_up(dim_in, 8)
    table_p = jnp.zeros((dim_in_p, D), table.dtype).at[:dim_in, :].set(table)
    if pack == 1:
        table_big = table_p
    else:
        table_big = jnp.zeros((pack * dim_in_p, lanes), table.dtype)
        for g in range(pack):
            table_big = table_big.at[g * dim_in_p:(g + 1) * dim_in_p,
                                     g * D:(g + 1) * D].set(table_p)

    # Row tiling: large tiles to amortize per-grid-step overhead (kernel is
    # purely memory-bound). 2048 packed rows = 8192 edges per step; in+out
    # blocks double-buffered stay around ~4 MiB of VMEM.
    rows = -(-E // pack)                                  # packed rows (ceil)
    tile_rows = min(max_tile_rows, _round_up(rows, 8))
    rows_p = _round_up(rows, tile_rows)
    E_pad = rows_p * pack

    idx = edge_onehot.astype(jnp.int32)
    attr = edge_attr
    if E_pad != E:
        # TODO(synk): padded tail rows compute garbage that is sliced off below;
        # padding indices with 0 keeps them in-range so the kernel stays branch-free.
        idx = jnp.pad(idx, (0, E_pad - E))
        attr = jnp.pad(attr, ((0, E_pad - E), (0, 0)))
    idx2 = idx.reshape(rows_p, pack)
    attr2 = attr.reshape(rows_p, lanes)                   # free: row-major

    kernel = functools.partial(_edge_onehot_kernel,
                               mask_hsg_edges=mask_hsg_edges,
                               dim_in_p=dim_in_p, pack=pack, d=D)
    out2 = pl.pallas_call(
        kernel,
        out_shape=jax.ShapeDtypeStruct((rows_p, lanes), out_dtype),
        grid=(rows_p // tile_rows,),
        in_specs=[
            pl.BlockSpec((tile_rows, pack), lambda i: (i, 0)),         # packed indices
            pl.BlockSpec((tile_rows, lanes), lambda i: (i, 0)),        # packed edge_attr
            pl.BlockSpec((pack * dim_in_p, lanes), lambda i: (0, 0)),  # resident table
        ],
        out_specs=pl.BlockSpec((tile_rows, lanes), lambda i: (i, 0)),
        compiler_params=pltpu.CompilerParams(
            dimension_semantics=("parallel",)),
    )(idx2, attr2, table_big)

    out = out2.reshape(E_pad, D)
    return out[:E] if E_pad != E else out


def edge_one_hot_ref(edge_onehot, edge_attr, table, *, mask_hsg_edges=False):
    embs = table[edge_onehot.astype(jnp.int32)]
    if mask_hsg_edges:
        return jnp.where((edge_onehot > 0)[:, None], embs, edge_attr)
    return embs + edge_attr


if __name__ == "__main__":
    # cfg.hsg.num_hierarchy_nodes assumed length 2 -> dim_in = 1 + 2*2 = 5
    dim_in = 5
    dim_out = 32

    key = jax.random.PRNGKey(0)
    k_tab, k_idx, k_attr = jax.random.split(key, 3)
    table = jax.random.normal(k_tab, (dim_in, dim_out), dtype=jnp.float32)

    ok = True
    for E in (256, 250):                       # aligned and ragged edge counts
        edge_onehot = jax.random.randint(k_idx, (E,), 0, dim_in, dtype=jnp.int32)
        edge_attr = jax.random.normal(k_attr, (E, dim_out), dtype=jnp.float32)
        for mask_flag in (False, True):        # cfg.hsg.mask_hsg_edges
            out = edge_one_hot(edge_onehot, edge_attr, table,
                               mask_hsg_edges=mask_flag)
            out = jax.block_until_ready(out)
            ref = edge_one_hot_ref(edge_onehot, edge_attr, table,
                                   mask_hsg_edges=mask_flag)
            ok = ok and bool(jnp.allclose(out, ref, atol=1e-5, rtol=1e-5))

    print("KERNEL_OK" if ok else "KERNEL_MISMATCH")
</pallas_src>

<mosaic_0001>
module attributes {stable_mosaic.version = 11 : i64} {
  func.func @_edge_onehot_kernel(%arg0: i32, %arg1: memref<64x4xi32, #tpu.memory_space<vmem>>, %arg2: memref<64x128xf32, #tpu.memory_space<vmem>>, %arg3: memref<32x128xf32, #tpu.memory_space<vmem>>, %arg4: memref<64x128xf32, #tpu.memory_space<vmem>>) attributes {dimension_semantics = [#tpu.dimension_semantics<parallel>], iteration_bounds = array<i64: 1>, scalar_prefetch = 0 : i64, scratch_operands = 0 : i64, tpu.core_type = #tpu.core_type<tc>, window_params = [{transform_indices = @transform_0, window_bounds = array<i64: 64, 4>}, {transform_indices = @transform_1, window_bounds = array<i64: 64, 128>}, {pipeline_mode = #tpu.pipeline_mode<synchronous>, transform_indices = @transform_2, window_bounds = array<i64: 32, 128>}, {transform_indices = @transform_3, window_bounds = array<i64: 64, 128>}]} {
    %0 = tpu.iota {dimensions = array<i32: 1>} : vector<64x32xi32>
    %c0 = arith.constant 0 : index
    %c0_0 = arith.constant 0 : index
    %1 = vector.load %arg1[%c0, %c0_0] : memref<64x4xi32, #tpu.memory_space<vmem>>, vector<64x1xi32>
    %2 = vector.broadcast %1 : vector<64x1xi32> to vector<64x32xi32>
    %3 = arith.cmpi eq, %2, %0 : vector<64x32xi32>
    %c0_1 = arith.constant 0 : index
    %c1 = arith.constant 1 : index
    %4 = vector.load %arg1[%c0_1, %c1] : memref<64x4xi32, #tpu.memory_space<vmem>>, vector<64x1xi32>
    %c8_i32 = arith.constant 8 : i32
    %5 = vector.broadcast %c8_i32 : i32 to vector<64x1xi32>
    %6 = arith.addi %4, %5 : vector<64x1xi32>
    %7 = vector.broadcast %6 : vector<64x1xi32> to vector<64x32xi32>
    %8 = arith.cmpi eq, %7, %0 : vector<64x32xi32>
    %9 = arith.ori %3, %8 : vector<64x32xi1>
    %c0_2 = arith.constant 0 : index
    %c2 = arith.constant 2 : index
    %10 = vector.load %arg1[%c0_2, %c2] : memref<64x4xi32, #tpu.memory_space<vmem>>, vector<64x1xi32>
    %c16_i32 = arith.constant 16 : i32
    %11 = vector.broadcast %c16_i32 : i32 to vector<64x1xi32>
    %12 = arith.addi %10, %11 : vector<64x1xi32>
    %13 = vector.broadcast %12 : vector<64x1xi32> to vector<64x32xi32>
    %14 = arith.cmpi eq, %13, %0 : vector<64x32xi32>
    %15 = arith.ori %9, %14 : vector<64x32xi1>
    %c0_3 = arith.constant 0 : index
    %c3 = arith.constant 3 : index
    %16 = vector.load %arg1[%c0_3, %c3] : memref<64x4xi32, #tpu.memory_space<vmem>>, vector<64x1xi32>
    %c24_i32 = arith.constant 24 : i32
    %17 = vector.broadcast %c24_i32 : i32 to vector<64x1xi32>
    %18 = arith.addi %16, %17 : vector<64x1xi32>
    %19 = vector.broadcast %18 : vector<64x1xi32> to vector<64x32xi32>
    %20 = arith.cmpi eq, %19, %0 : vector<64x32xi32>
    %21 = arith.ori %15, %20 : vector<64x32xi1>
    %22 = arith.extui %21 : vector<64x32xi1> to vector<64x32xi32>
    %23 = arith.sitofp %22 : vector<64x32xi32> to vector<64x32xf32>
    %c0_4 = arith.constant 0 : index
    %c0_5 = arith.constant 0 : index
    %24 = vector.load %arg3[%c0_4, %c0_5] : memref<32x128xf32, #tpu.memory_space<vmem>>, vector<32x128xf32>
    %cst = arith.constant dense<0.000000e+00> : vector<64x128xf32>
    %25 = tpu.matmul %23, %24, %cst {dimension_numbers = #tpu.dot_dimension_numbers<[1], [0], [0], [1], [0, 0, 1, 1], [], []>} : vector<64x32xf32>, vector<32x128xf32>, vector<64x128xf32> -> vector<64x128xf32>
    %c0_6 = arith.constant 0 : index
    %c0_7 = arith.constant 0 : index
    %26 = vector.load %arg2[%c0_6, %c0_7] : memref<64x128xf32, #tpu.memory_space<vmem>>, vector<64x128xf32>
    %27 = arith.addf %25, %26 : vector<64x128xf32>
    %c0_8 = arith.constant 0 : index
    %c0_9 = arith.constant 0 : index
    %28 = vector.load %arg4[%c0_8, %c0_9] : memref<64x128xf32, #tpu.memory_space<vmem>>, vector<64x128xf32>
    tpu.vector_store %arg4[%c0_8, %c0_9], %27 {strides = array<i32>} : memref<64x128xf32, #tpu.memory_space<vmem>>, vector<64x128xf32>,
    return
  }
  func.func @transform_0(%arg0: i32) -> (i32, i32) {
    %c0_i32 = arith.constant 0 : i32
    %c0_i32_0 = arith.constant 0 : i32
    return %arg0, %c0_i32 : i32, i32
  }
  func.func @transform_1(%arg0: i32) -> (i32, i32) {
    %c0_i32 = arith.constant 0 : i32
    %c0_i32_0 = arith.constant 0 : i32
    return %arg0, %c0_i32 : i32, i32
  }
  func.func @transform_2(%arg0: i32) -> (i32, i32) {
    %c0_i32 = arith.constant 0 : i32
    %c0_i32_0 = arith.constant 0 : i32
    %c0_i32_1 = arith.constant 0 : i32
    return %c0_i32, %c0_i32_0 : i32, i32
  }
  func.func @transform_3(%arg0: i32) -> (i32, i32) {
    %c0_i32 = arith.constant 0 : i32
    %c0_i32_0 = arith.constant 0 : i32
    return %arg0, %c0_i32 : i32, i32
  }
}

</mosaic_0001>

<llo_original>
// kernel: tpu_custom_call.1
$region0: #{tpu_custom_call.1}
  #allocation0 [shape = 'u32[]', space=smem, size = 0x4, offset = 0x4, fixed_abs, tag = 'smem constant byte address 0x4 - core index']
  #allocation1 [shape = 'u32[72,128]{1,0:T(1,128)}', space=vmem, size = 0x9000, scoped, tag = 'internal scratch']
  %s0 = inlined_call_operand.vmem [shape: s32[64,4], index: 0, kind: input, shape index: {}]
  %s1 = inlined_call_operand.vmem [shape: f32[64,128], index: 1, kind: input, shape index: {}]
  %s2 = inlined_call_operand.hbm [shape: f32[32,128], index: 2, kind: input, shape index: {}]
  %s3 = inlined_call_operand.hbm [shape: f32[64,128], index: 3, kind: output, shape index: {}]
  %s4 = sld [smem:[#allocation0]]
  $region26: #{tpu_custom_call.1} parent=0
    _
  %s6 = ssub.s32 1, %s4
  %s7 = scalar_select 0, %s6, %s4
  $region1: #{tpu_custom_call.1} parent=0
    #allocation2 [shape = 'u8[16384]{0}', space=vmem, size = 0x4000, scoped, tag = 'input window, operand 2, single buffered']
    #allocation3 [shape = 's32[1]{0}', space=sflag, size = 0x4, scoped, tag = 'scoped memory for tpu_custom_call.1']
    #allocation4 [shape = 's32[1]{0}', space=sflag, size = 0x4, scoped, tag = 'scoped memory for tpu_custom_call.1']
    #allocation5 [shape = 'u8[32768]{0}', space=vmem, size = 0x8000, scoped, tag = 'output window, operand 0, single buffered']
    %8 = vsyncpa [#allocation3], 0
    %9 = vsyncpa [#allocation4], 0
    // Predicated region
    $region2: #{tpu_custom_call.1} parent=1 // pred_check
      _
    $region3: #{tpu_custom_call.1} parent=1 // pred_check_branch
      %11 = sbr.rel (0) target = $region5
    $region4: #{tpu_custom_call.1} parent=1 // pred_region
      _
    $region5: #{tpu_custom_call.1} parent=1 // pred_fallthru
      _
    // Predicated region
    $region6: #{tpu_custom_call.1} parent=1 // pred_check
      _
    $region7: #{tpu_custom_call.1} parent=1 // pred_check_branch
      %13 = sbr.rel (0) target = $region9
    $region8: #{tpu_custom_call.1} parent=1 // pred_region
      _
    $region9: #{tpu_custom_call.1} parent=1 // pred_fallthru
      _
    // Predicated region
    $region10: #{tpu_custom_call.1} parent=1 // pred_check
      _
    $region11: #{tpu_custom_call.1} parent=1 // pred_check_branch
      %15 = sbr.rel (0) target = $region13
    $region12: #{tpu_custom_call.1} parent=1 // pred_region
      %17 = vsyncadd [#allocation3], 0
      %s18 = sshll.u32 %s2, 4
      %s19 = int_to_ptr.hbm [resolvable:$true] %s18
      %s20 = sshll.u32 [#allocation2], 4
      %s21 = int_to_ptr.vmem [resolvable:$true] %s20
      %26 = dma.hbm_to_vmem [thread:$0]  %s19, 512, %s21, [#allocation3], 128, 128, 8
    $region13: #{tpu_custom_call.1} parent=1 // pred_fallthru
      _
    // Predicated region
    $region14: #{tpu_custom_call.1} parent=1 // pred_check
      _
    $region15: #{tpu_custom_call.1} parent=1 // pred_check_branch
      %28 = sbr.rel (0) target = $region17
    $region16: #{tpu_custom_call.1} parent=1 // pred_region
      %30 = dma.done [#allocation3], 512
    $region17: #{tpu_custom_call.1} parent=1 // pred_fallthru
      _
    %v31 = vlaneseq
    %v32 = vand.u32 %v31, 127
    %v33 = vld [vmem:[%s0] sm:$0xff]
    %v34 = vld [vmem:[%s0 + $0x8] sm:$0xff]
    %v35 = vld [vmem:[%s0 + $0x10] sm:$0xff]
    %v36 = vld [vmem:[%s0 + $0x18] sm:$0xff]
    %v37 = vld [vmem:[%s0 + $0x20] sm:$0xff]
    %v38 = vld [vmem:[%s0 + $0x28] sm:$0xff]
    %v39 = vld [vmem:[%s0 + $0x30] sm:$0xff]
    %v40 = vld [vmem:[%s0 + $0x38] sm:$0xff]
    %41 = vset.pattern.permute.xlu0 0
    %42 = vperm.xlu0 %41, %v33
    %v43 = vpop.permute.xlu0 %42
    %44 = vset.pattern.permute.xlu0 0
    %45 = vperm.xlu0 %44, %v34
    %v46 = vpop.permute.xlu0 %45
    %47 = vset.pattern.permute.xlu0 0
    %48 = vperm.xlu0 %47, %v35
    %v49 = vpop.permute.xlu0 %48
    %50 = vset.pattern.permute.xlu0 0
    %51 = vperm.xlu0 %50, %v36
    %v52 = vpop.permute.xlu0 %51
    %53 = vset.pattern.permute.xlu0 0
    %54 = vperm.xlu0 %53, %v37
    %v55 = vpop.permute.xlu0 %54
    %56 = vset.pattern.permute.xlu0 0
    %57 = vperm.xlu0 %56, %v38
    %v58 = vpop.permute.xlu0 %57
    %59 = vset.pattern.permute.xlu0 0
    %60 = vperm.xlu0 %59, %v39
    %v61 = vpop.permute.xlu0 %60
    %62 = vset.pattern.permute.xlu0 0
    %63 = vperm.xlu0 %62, %v40
    %v64 = vpop.permute.xlu0 %63
    %vm65 = vcmp.eq.s32.totalorder %v43, %v32
    %vm66 = vcmp.eq.s32.totalorder %v46, %v32
    %vm67 = vcmp.eq.s32.totalorder %v49, %v32
    %vm68 = vcmp.eq.s32.totalorder %v52, %v32
    %vm69 = vcmp.eq.s32.totalorder %v55, %v32
    %vm70 = vcmp.eq.s32.totalorder %v58, %v32
    %vm71 = vcmp.eq.s32.totalorder %v61, %v32
    %vm72 = vcmp.eq.s32.totalorder %v64, %v32
    %v73 = vadd.s32 %v33, 8
    %v74 = vadd.s32 %v34, 8
    %v75 = vadd.s32 %v35, 8
    %v76 = vadd.s32 %v36, 8
    %v77 = vadd.s32 %v37, 8
    %v78 = vadd.s32 %v38, 8
    %v79 = vadd.s32 %v39, 8
    %v80 = vadd.s32 %v40, 8
    %81 = vset.pattern.permute.xlu0 1
    %82 = vperm.xlu0 %81, %v73
    %v83 = vpop.permute.xlu0 %82
    %84 = vset.pattern.permute.xlu0 1
    %85 = vperm.xlu0 %84, %v74
    %v86 = vpop.permute.xlu0 %85
    %87 = vset.pattern.permute.xlu0 1
    %88 = vperm.xlu0 %87, %v75
    %v89 = vpop.permute.xlu0 %88
    %90 = vset.pattern.permute.xlu0 1
    %91 = vperm.xlu0 %90, %v76
    %v92 = vpop.permute.xlu0 %91
    %93 = vset.pattern.permute.xlu0 1
    %94 = vperm.xlu0 %93, %v77
    %v95 = vpop.permute.xlu0 %94
    %96 = vset.pattern.permute.xlu0 1
    %97 = vperm.xlu0 %96, %v78
    %v98 = vpop.permute.xlu0 %97
    %99 = vset.pattern.permute.xlu0 1
    %100 = vperm.xlu0 %99, %v79
    %v101 = vpop.permute.xlu0 %100
    %102 = vset.pattern.permute.xlu0 1
    %103 = vperm.xlu0 %102, %v80
    %v104 = vpop.permute.xlu0 %103
    %vm105 = vcmp.eq.s32.totalorder %v83, %v32
    %vm106 = vcmp.eq.s32.totalorder %v86, %v32
    %vm107 = vcmp.eq.s32.totalorder %v89, %v32
    %vm108 = vcmp.eq.s32.totalorder %v92, %v32
    %vm109 = vcmp.eq.s32.totalorder %v95, %v32
    %vm110 = vcmp.eq.s32.totalorder %v98, %v32
    %vm111 = vcmp.eq.s32.totalorder %v101, %v32
    %vm112 = vcmp.eq.s32.totalorder %v104, %v32
    %vm113 = vmor %vm65, %vm105
    %vm114 = vmor %vm66, %vm106
    %vm115 = vmor %vm67, %vm107
    %vm116 = vmor %vm68, %vm108
    %vm117 = vmor %vm69, %vm109
    %vm118 = vmor %vm70, %vm110
    %vm119 = vmor %vm71, %vm111
    %vm120 = vmor %vm72, %vm112
    %v121 = vadd.s32 %v33, 16
    %v122 = vadd.s32 %v34, 16
    %v123 = vadd.s32 %v35, 16
    %v124 = vadd.s32 %v36, 16
    %v125 = vadd.s32 %v37, 16
    %v126 = vadd.s32 %v38, 16
    %v127 = vadd.s32 %v39, 16
    %v128 = vadd.s32 %v40, 16
    %129 = vset.pattern.permute.xlu0 2
    %130 = vperm.xlu0 %129, %v121
    %v131 = vpop.permute.xlu0 %130
    %132 = vset.pattern.permute.xlu0 2
    %133 = vperm.xlu0 %132, %v122
    %v134 = vpop.permute.xlu0 %133
    %135 = vset.pattern.permute.xlu0 2
    %136 = vperm.xlu0 %135, %v123
    %v137 = vpop.permute.xlu0 %136
    %138 = vset.pattern.permute.xlu0 2
    %139 = vperm.xlu0 %138, %v124
    %v140 = vpop.permute.xlu0 %139
    %141 = vset.pattern.permute.xlu0 2
    %142 = vperm.xlu0 %141, %v125
    %v143 = vpop.permute.xlu0 %142
    %144 = vset.pattern.permute.xlu0 2
    %145 = vperm.xlu0 %144, %v126
    %v146 = vpop.permute.xlu0 %145
    %147 = vset.pattern.permute.xlu0 2
    %148 = vperm.xlu0 %147, %v127
    %v149 = vpop.permute.xlu0 %148
    %150 = vset.pattern.permute.xlu0 2
    %151 = vperm.xlu0 %150, %v128
    %v152 = vpop.permute.xlu0 %151
    %vm153 = vcmp.eq.s32.totalorder %v131, %v32
    %vm154 = vcmp.eq.s32.totalorder %v134, %v32
    %vm155 = vcmp.eq.s32.totalorder %v137, %v32
    %vm156 = vcmp.eq.s32.totalorder %v140, %v32
    %vm157 = vcmp.eq.s32.totalorder %v143, %v32
    %vm158 = vcmp.eq.s32.totalorder %v146, %v32
    %vm159 = vcmp.eq.s32.totalorder %v149, %v32
    %vm160 = vcmp.eq.s32.totalorder %v152, %v32
    %vm161 = vmor %vm113, %vm153
    %vm162 = vmor %vm114, %vm154
    %vm163 = vmor %vm115, %vm155
    %vm164 = vmor %vm116, %vm156
    %vm165 = vmor %vm117, %vm157
    %vm166 = vmor %vm118, %vm158
    %vm167 = vmor %vm119, %vm159
    %vm168 = vmor %vm120, %vm160
    %v169 = vadd.s32 %v33, 24
    %v170 = vadd.s32 %v34, 24
    %v171 = vadd.s32 %v35, 24
    %v172 = vadd.s32 %v36, 24
    %v173 = vadd.s32 %v37, 24
    %v174 = vadd.s32 %v38, 24
    %v175 = vadd.s32 %v39, 24
    %v176 = vadd.s32 %v40, 24
    %177 = vset.pattern.permute.xlu0 3
    %178 = vperm.xlu0 %177, %v169
    %v179 = vpop.permute.xlu0 %178
    %180 = vset.pattern.permute.xlu0 3
    %181 = vperm.xlu0 %180, %v170
    %v182 = vpop.permute.xlu0 %181
    %183 = vset.pattern.permute.xlu0 3
    %184 = vperm.xlu0 %183, %v171
    %v185 = vpop.permute.xlu0 %184
    %186 = vset.pattern.permute.xlu0 3
    %187 = vperm.xlu0 %186, %v172
    %v188 = vpop.permute.xlu0 %187
    %189 = vset.pattern.permute.xlu0 3
    %190 = vperm.xlu0 %189, %v173
    %v191 = vpop.permute.xlu0 %190
    %192 = vset.pattern.permute.xlu0 3
    %193 = vperm.xlu0 %192, %v174
    %v194 = vpop.permute.xlu0 %193
    %195 = vset.pattern.permute.xlu0 3
    %196 = vperm.xlu0 %195, %v175
    %v197 = vpop.permute.xlu0 %196
    %198 = vset.pattern.permute.xlu0 3
    %199 = vperm.xlu0 %198, %v176
    %v200 = vpop.permute.xlu0 %199
    %vm201 = vcmp.eq.s32.totalorder %v179, %v32
    %vm202 = vcmp.eq.s32.totalorder %v182, %v32
    %vm203 = vcmp.eq.s32.totalorder %v185, %v32
    %vm204 = vcmp.eq.s32.totalorder %v188, %v32
    %vm205 = vcmp.eq.s32.totalorder %v191, %v32
    %vm206 = vcmp.eq.s32.totalorder %v194, %v32
    %vm207 = vcmp.eq.s32.totalorder %v197, %v32
    %vm208 = vcmp.eq.s32.totalorder %v200, %v32
    %vm209 = vmor %vm161, %vm201
    %vm210 = vmor %vm162, %vm202
    %vm211 = vmor %vm163, %vm203
    %vm212 = vmor %vm164, %vm204
    %vm213 = vmor %vm165, %vm205
    %vm214 = vmor %vm166, %vm206
    %vm215 = vmor %vm167, %vm207
    %vm216 = vmor %vm168, %vm208
    %v217 = vsel %vm209, 1, 0
    %v218 = vsel %vm210, 1, 0
    %v219 = vsel %vm211, 1, 0
    %v220 = vsel %vm212, 1, 0
    %v221 = vsel %vm213, 1, 0
    %v222 = vsel %vm214, 1, 0
    %v223 = vsel %vm215, 1, 0
    %v224 = vsel %vm216, 1, 0
    %v225 = vcvt.s32.f32 %v217
    %v226 = vcvt.s32.f32 %v218
    %v227 = vcvt.s32.f32 %v219
    %v228 = vcvt.s32.f32 %v220
    %v229 = vcvt.s32.f32 %v221
    %v230 = vcvt.s32.f32 %v222
    %v231 = vcvt.s32.f32 %v223
    %v232 = vcvt.s32.f32 %v224
    %v233 = vld [vmem:[#allocation2] sm:$0xff]
    %v234 = vld [vmem:[#allocation2 + $0x8] sm:$0xff]
    %v235 = vld [vmem:[#allocation2 + $0x10] sm:$0xff]
    %v236 = vld [vmem:[#allocation2 + $0x18] sm:$0xff]
    %v237 = vld [vmem:[%s1] sm:$0xff]
    %v238 = vld [vmem:[%s1 + $0x8] sm:$0xff]
    %v239 = vld [vmem:[%s1 + $0x10] sm:$0xff]
    %v240 = vld [vmem:[%s1 + $0x18] sm:$0xff]
    %v241 = vld [vmem:[%s1 + $0x20] sm:$0xff]
    %v242 = vld [vmem:[%s1 + $0x28] sm:$0xff]
    %v243 = vld [vmem:[%s1 + $0x30] sm:$0xff]
    %v244 = vld [vmem:[%s1 + $0x38] sm:$0xff]
    %vm245 = vcmask 261120
    %v247 = vsel %vm245, %v225, 0
    %v250 = vsel %vm245, %v226, 0
    %v253 = vsel %vm245, %v227, 0
    %v256 = vsel %vm245, %v228, 0
    %v259 = vsel %vm245, %v229, 0
    %v262 = vsel %vm245, %v230, 0
    %v265 = vsel %vm245, %v231, 0
    %v268 = vsel %vm245, %v232, 0
    %270 = vmatpush.msra.mxu0 0.0
    %271 = vmatpush.msra.mxu0 0.0
    %272 = vmatpush.msra.mxu0 0.0
    %273 = vmatpush.msra.mxu0 0.0
    %274 = vmatpush.msra.mxu0 0.0
    %275 = vmatpush.msra.mxu0 0.0
    %276 = vmatpush.msra.mxu0 0.0
    %277 = vmatpush.msra.mxu0 0.0
    %278 = vmatpush.msra.mxu0 0.0
    %279 = vmatpush.msra.mxu0 0.0
    %280 = vmatpush.msra.mxu0 0.0
    %281 = vmatpush.msra.mxu0 0.0
    %282 = vmatpush.msra.mxu0 %v236
    %283 = vmatpush.msra.mxu0 %v235
    %284 = vmatpush.msra.mxu0 %v234
    %285 = vmatpush.msra.mxu0 %v233
    %286 = vmatmul.f32.gmra.mxu0 %v247
    %v287 = vpop.f32.mrf.mxu0
    %v288 = vadd.f32 %v237, %v287
    %289 = vmatmul.f32.gmra.mxu0 %v250
    %v290 = vpop.f32.mrf.mxu0
    %v291 = vadd.f32 %v238, %v290
    %292 = vmatmul.f32.gmra.mxu0 %v253
    %v293 = vpop.f32.mrf.mxu0
    %v294 = vadd.f32 %v239, %v293
    %295 = vmatmul.f32.gmra.mxu0 %v256
    %v296 = vpop.f32.mrf.mxu0
    %v297 = vadd.f32 %v240, %v296
    %298 = vmatmul.f32.gmra.mxu0 %v259
    %v299 = vpop.f32.mrf.mxu0
    %v300 = vadd.f32 %v241, %v299
    %301 = vmatmul.f32.gmra.mxu0 %v262
    %v302 = vpop.f32.mrf.mxu0
    %v303 = vadd.f32 %v242, %v302
    %304 = vmatmul.f32.gmra.mxu0 %v265
    %v305 = vpop.f32.mrf.mxu0
    %v306 = vadd.f32 %v243, %v305
    %307 = vmatmul.f32.gmra.mxu0 %v268
    %v308 = vpop.f32.mrf.mxu0
    %v309 = vadd.f32 %v244, %v308
    %310 = vdwg.mxu0
    %311 = vst [vmem:[#allocation5] sm:$0xff] %v288
    %312 = vst [vmem:[#allocation5 + $0x8] sm:$0xff] %v291
    %313 = vst [vmem:[#allocation5 + $0x10] sm:$0xff] %v294
    %314 = vst [vmem:[#allocation5 + $0x18] sm:$0xff] %v297
    %315 = vst [vmem:[#allocation5 + $0x20] sm:$0xff] %v300
    %316 = vst [vmem:[#allocation5 + $0x28] sm:$0xff] %v303
    %317 = vst [vmem:[#allocation5 + $0x30] sm:$0xff] %v306
    %318 = vst [vmem:[#allocation5 + $0x38] sm:$0xff] %v309
    // Predicated region
    $region18: #{tpu_custom_call.1} parent=1 // pred_check
      _
    $region19: #{tpu_custom_call.1} parent=1 // pred_check_branch
      %320 = sbr.rel (0) target = $region21
    $region20: #{tpu_custom_call.1} parent=1 // pred_region
      %322 = vsyncadd [#allocation4], 0
      %s323 = sshll.u32 [#allocation5], 4
      %s324 = int_to_ptr.vmem [resolvable:$true] %s323
      %s325 = sshll.u32 %s3, 4
      %s326 = int_to_ptr.hbm [resolvable:$true] %s325
      %331 = dma.vmem_to_hbm [thread:$0]  %s324, 1024, %s326, [#allocation4], 128, 128, 8
    $region21: #{tpu_custom_call.1} parent=1 // pred_fallthru
      _
    // Predicated region
    $region22: #{tpu_custom_call.1} parent=1 // pred_check
      _
    $region23: #{tpu_custom_call.1} parent=1 // pred_check_branch
      %333 = sbr.rel (0) target = $region25
    $region24: #{tpu_custom_call.1} parent=1 // pred_region
      %335 = dma.done [#allocation4], 1024
    $region25: #{tpu_custom_call.1} parent=1 // pred_fallthru
      _
    %336 = vsyncpa [#allocation3], 1
    %337 = vsyncpa [#allocation4], 1

</llo_original>
